<compile_context>
chip_gen: v7x
topology: tpu7x:2x2x1
jax: 0.10.0
libtpu: 0.0.40
codegen_flags: <defaults>
</compile_context>

<pallas_src>
import functools

import jax
import jax.numpy as jnp
from jax import lax
from jax.experimental import pallas as pl
from jax.experimental.pallas import tpu as pltpu


def _layernorm(x, gamma, beta, eps=1e-5):
    # PyTorch nn.LayerNorm: biased variance over the last axis, then affine.
    mean = jnp.mean(x, axis=-1, keepdims=True)
    var = jnp.mean(jnp.square(x - mean), axis=-1, keepdims=True)
    return (x - mean) * lax.rsqrt(var + eps) * gamma + beta


def sru_kernel(x_ref, c0_ref, w_ref, b_g_ref,
               g_gate_ref, b_gate_ref, g_act_ref, b_act_ref,
               h_ref, c_out_ref,
               c_scratch, *, seq_len):
    t_idx = pl.program_id(1)
    Bt, Tc, D = x_ref.shape
    H = c0_ref.shape[-1]

    x = x_ref[...]                                   # (Bt, Tc, D) native dtype (MXU path)

    # ---- fused projection: one MXU pass over x (weights packed as (D, 3H)) ----
    proj = jnp.dot(x.reshape(Bt * Tc, D), w_ref[...],
                   preferred_element_type=jnp.float32)          # (Bt*Tc, 3H) f32
    x_tilde = proj[:, :H].reshape(Bt, Tc, H)
    g_pre = proj[:, H:] + b_g_ref[...].astype(jnp.float32)      # (Bt*Tc, 2H)

    # ---- gates: sigmoid(LayerNorm(gate(x))) ----
    gate = jax.nn.sigmoid(
        _layernorm(g_pre,
                   g_gate_ref[...].astype(jnp.float32),
                   b_gate_ref[...].astype(jnp.float32)))
    gate = gate.reshape(Bt, Tc, 2 * H)
    f = gate[..., :H]
    r = gate[..., H:]
    d = (1.0 - f) * x_tilde                          # (Bt, Tc, H) f32

    # Padded time steps (T rounded up to a multiple of t_chunk) become identity
    # steps so the carried cell state is untouched past the real sequence end.
    if seq_len is not None:
        t_iota = lax.broadcasted_iota(jnp.int32, (1, Tc, 1), 1)
        valid = (t_idx * Tc + t_iota) < seq_len
        f = jnp.where(valid, f, 1.0)
        d = jnp.where(valid, d, 0.0)

    # ---- cell-state carry across time chunks ----
    @pl.when(t_idx == 0)
    def _():
        c_scratch[...] = c0_ref[...].astype(jnp.float32)

    # ---- chunk-local associative scan over time:
    #      c_t = f_t * c_{t-1} + d_t   ==>   c_t = F_t * c_in + D_t, with the
    #      (F, D) pairs composed in log2(Tc) dense VPU passes. ----
    F, Dacc = f, d
    s = 1
    while s < Tc:
        f_pad = jnp.ones((Bt, s, H), jnp.float32)
        d_pad = jnp.zeros((Bt, s, H), jnp.float32)
        F_prev = jnp.concatenate([f_pad, F[:, :Tc - s, :]], axis=1)
        D_prev = jnp.concatenate([d_pad, Dacc[:, :Tc - s, :]], axis=1)
        Dacc = F * D_prev + Dacc                     # uses old F
        F = F * F_prev
        s *= 2

    c_in = c_scratch[...]                            # (Bt, 1, H) f32
    all_c = F * c_in + Dacc                          # (Bt, Tc, H)
    c_scratch[...] = all_c[:, Tc - 1:Tc, :]

    # ---- fused output: h = r * sigmoid(LN(c)) + (1 - r) * x  (needs D == H) ----
    act = jax.nn.sigmoid(
        _layernorm(all_c,
                   g_act_ref[...].reshape(1, 1, H).astype(jnp.float32),
                   b_act_ref[...].reshape(1, 1, H).astype(jnp.float32)))
    h = r * act + (1.0 - r) * x.astype(jnp.float32)
    h_ref[...] = h.astype(h_ref.dtype)

    @pl.when(t_idx == pl.num_programs(1) - 1)
    def _():
        c_out_ref[...] = c_scratch[...].astype(c_out_ref.dtype)


def _largest_divisor_le(n, target):
    target = max(1, min(n, target))
    for d in range(target, 0, -1):
        if n % d == 0:
            return d
    return 1


def _round_up(x, m):
    return ((x + m - 1) // m) * m


def sru_forward(x, c, params, *, b_tile=None, t_chunk=None, vmem_limit_bytes=None):
    """SRU forward. x: (B, T, D); c: (B, H) or None. Returns (h, c_final)."""
    B, T, D = x.shape
    H = params["w_cat"].shape[1] // 3
    assert D == H, "SRU forward's `(1 - r) * x` term requires input_size == hidden_size"
    dtype = x.dtype
    if c is None:
        c = jnp.zeros((B, H), dtype=dtype)

    # Matmul runs in the input dtype (bf16 x/weights => full-rate MXU);
    # LN / gate / recurrence math stays f32 inside the kernel.
    w = params["w_cat"].astype(dtype)

    itemsize = jnp.dtype(dtype).itemsize
    sub = 8 if itemsize >= 4 else 16                 # sublane packing (f32 / bf16)

    # VMEM budget: use most of the chip (v5e/v6e 128 MiB, v7x 64 MiB).
    if vmem_limit_bytes is None:
        cap = 64 * 1024 * 1024
        try:
            cap = getattr(pltpu.get_tpu_info(), "vmem_capacity_bytes", cap)
        except Exception:
            pass
        vmem_limit_bytes = int(cap) * 3 // 4

    # Batch tile: take the whole batch (up to 256) so the serial time dependency
    # is amortized over fat (Bt*H) vectors; keep >= 2 tiles only when B is large
    # (gives v7x's 2 TensorCores something to shard on the "parallel" axis).
    if b_tile is None:
        b_tile = B if B <= 256 else _largest_divisor_le(B, 256)
    assert B % b_tile == 0

    # Time chunk: target 128 steps, shrink only if the VMEM estimate overflows.
    if t_chunk is None:
        t_chunk = min(128, _round_up(T, sub))

        def _est(tc):
            xh = 2 * 2 * b_tile * tc * (D + H) * itemsize      # x/h double-buffered
            wres = 2 * (D * 3 * H + 6 * H) * itemsize          # weight + small params
            tmp = 12 * b_tile * tc * H * 4                     # live f32 temps (proj/gate/scan)
            return xh + wres + tmp

        while t_chunk > sub and _est(t_chunk) > vmem_limit_bytes * 3 // 4:
            t_chunk //= 2
        t_chunk = max(sub, (t_chunk // sub) * sub)
    assert t_chunk % 8 == 0, "t_chunk must be a multiple of 8 (sublane tiling)"

    # Pad T up to a multiple of t_chunk (masked inside the kernel) instead of
    # degrading to tiny chunks for awkward sequence lengths.
    T_pad = _round_up(T, t_chunk)
    if T_pad != T:
        x_in = jnp.pad(x, ((0, 0), (0, T_pad - T), (0, 0)))
        seq_len = T
    else:
        x_in = x
        seq_len = None

    c0 = c.astype(dtype).reshape(B, 1, H)
    grid = (B // b_tile, T_pad // t_chunk)           # (parallel batch, sequential time)

    kernel = functools.partial(sru_kernel, seq_len=seq_len)

    h, c_out = pl.pallas_call(
        kernel,
        out_shape=(jax.ShapeDtypeStruct((B, T_pad, H), dtype),
                   jax.ShapeDtypeStruct((B, 1, H), dtype)),
        grid_spec=pltpu.PrefetchScalarGridSpec(
            num_scalar_prefetch=0,
            grid=grid,
            in_specs=[
                pl.BlockSpec((b_tile, t_chunk, D), lambda b, t: (b, t, 0)),   # x (native layout)
                pl.BlockSpec((b_tile, 1, H), lambda b, t: (b, 0, 0)),         # c0
                pl.BlockSpec((D, 3 * H), lambda b, t: (0, 0)),                # packed weight (grid-invariant)
                pl.BlockSpec((1, 2 * H), lambda b, t: (0, 0)),                # gate bias
                pl.BlockSpec((1, 2 * H), lambda b, t: (0, 0)),                # gate LN gamma
                pl.BlockSpec((1, 2 * H), lambda b, t: (0, 0)),                # gate LN beta
                pl.BlockSpec((1, H), lambda b, t: (0, 0)),                    # act LN gamma
                pl.BlockSpec((1, H), lambda b, t: (0, 0)),                    # act LN beta
            ],
            out_specs=(
                pl.BlockSpec((b_tile, t_chunk, H), lambda b, t: (b, t, 0)),   # h (native layout)
                pl.BlockSpec((b_tile, 1, H), lambda b, t: (b, 0, 0)),         # c_final (revisited)
            ),
            scratch_shapes=[
                pltpu.VMEM((b_tile, 1, H), jnp.float32),       # carried cell state
            ],
        ),
        compiler_params=pltpu.CompilerParams(
            dimension_semantics=("parallel", "arbitrary"),
            vmem_limit_bytes=int(vmem_limit_bytes),
        ),
    )(x_in, c0, w, params["b_g"],
      params["g_gate"], params["b_gate"], params["g_act"], params["b_act"])

    if T_pad != T:
        h = h[:, :T]
    return h, c_out.reshape(B, H)


def init_params(key, input_size, hidden_size, dtype=jnp.float32):
    """Deterministic init matching the torch module's parameter shapes (weights
    stored as (in, out) and fused into a single (D, 3H) matrix)."""
    k1, k2, k3 = jax.random.split(key, 3)
    bound = 1.0 / (input_size ** 0.5)
    w_lt = jax.random.uniform(k1, (input_size, hidden_size), dtype,
                              minval=-bound, maxval=bound)
    w_g = jax.random.uniform(k2, (input_size, 2 * hidden_size), dtype,
                             minval=-bound, maxval=bound)
    b_g = jax.random.uniform(k3, (1, 2 * hidden_size), dtype,
                             minval=-bound, maxval=bound)
    w_cat = jnp.concatenate([w_lt, w_g], axis=1)     # (D, 3H) fused weight
    g_gate = jnp.ones((1, 2 * hidden_size), dtype)
    b_gate = jnp.zeros((1, 2 * hidden_size), dtype)
    g_act = jnp.ones((1, hidden_size), dtype)
    b_act = jnp.zeros((1, hidden_size), dtype)
    return dict(w_cat=w_cat, b_g=b_g, g_gate=g_gate, b_gate=b_gate,
                g_act=g_act, b_act=b_act)


def sru_reference(x, c0, params):
    """Pure-JAX reference matching the PyTorch module's forward."""
    H = params["w_cat"].shape[1] // 3
    xf = x.astype(jnp.float32)
    proj = jnp.einsum("btd,dh->bth", xf, params["w_cat"].astype(jnp.float32),
                      precision=lax.Precision.HIGHEST)
    x_tilde = proj[..., :H]
    g_pre = proj[..., H:] + params["b_g"][0].astype(jnp.float32)
    gate = jax.nn.sigmoid(_layernorm(g_pre,
                                     params["g_gate"][0].astype(jnp.float32),
                                     params["b_gate"][0].astype(jnp.float32)))
    f = gate[..., :H]
    r = gate[..., H:]
    d = (1.0 - f) * x_tilde

    def step(c, fd):
        ft, dt = fd
        c = ft * c + dt
        return c, c

    c_fin, all_c = lax.scan(step, c0.astype(jnp.float32),
                            (jnp.moveaxis(f, 1, 0), jnp.moveaxis(d, 1, 0)))
    all_c = jnp.moveaxis(all_c, 0, 1)
    act = jax.nn.sigmoid(_layernorm(all_c,
                                    params["g_act"][0].astype(jnp.float32),
                                    params["b_act"][0].astype(jnp.float32)))
    h = r * act + (1.0 - r) * xf
    return h.astype(x.dtype), c_fin.astype(x.dtype)


if __name__ == "__main__":
    # Small shapes: batch=2, seq=16, input=hidden=32 (D == H required by the
    # module's `(1 - r) * x` term).  t_chunk=8 -> 2 time chunks, exercising the
    # carried cell state across grid iterations.
    B, T, D, H = 2, 16, 32, 32

    key = jax.random.PRNGKey(0)
    k_x, k_p = jax.random.split(key)
    x = jax.random.normal(k_x, (B, T, D), dtype=jnp.float32)
    params = init_params(k_p, D, H, dtype=jnp.float32)

    h, c_fin = sru_forward(x, None, params, t_chunk=8)
    jax.block_until_ready((h, c_fin))
    assert h.shape == (B, T, H) and c_fin.shape == (B, H)
    assert bool(jnp.all(jnp.isfinite(h))) and bool(jnp.all(jnp.isfinite(c_fin)))

    h_ref, c_ref = sru_reference(x, jnp.zeros((B, H), jnp.float32), params)
    assert bool(jnp.allclose(h, h_ref, atol=1e-2, rtol=1e-2)), \
        float(jnp.max(jnp.abs(h - h_ref)))
    assert bool(jnp.allclose(c_fin, c_ref, atol=1e-2, rtol=1e-2)), \
        float(jnp.max(jnp.abs(c_fin - c_ref)))

    # Ragged sequence length (T=13 padded to 16): exercises the padding mask
    # and the identity-step handling of the carried cell state.
    T2 = 13
    x2 = jax.random.normal(jax.random.PRNGKey(1), (B, T2, D), dtype=jnp.float32)
    h2, c2 = sru_forward(x2, None, params, t_chunk=8)
    jax.block_until_ready((h2, c2))
    h2_ref, c2_ref = sru_reference(x2, jnp.zeros((B, H), jnp.float32), params)
    assert bool(jnp.allclose(h2, h2_ref, atol=1e-2, rtol=1e-2)), \
        float(jnp.max(jnp.abs(h2 - h2_ref)))
    assert bool(jnp.allclose(c2, c2_ref, atol=1e-2, rtol=1e-2)), \
        float(jnp.max(jnp.abs(c2 - c2_ref)))

    # bf16 smoke test: matmul runs bf16 on the MXU, elementwise math stays f32.
    xb = x.astype(jnp.bfloat16)
    pb = {k: v.astype(jnp.bfloat16) for k, v in params.items()}
    hb, cb = sru_forward(xb, None, pb)
    jax.block_until_ready((hb, cb))
    assert hb.dtype == jnp.bfloat16 and cb.shape == (B, H)
    assert bool(jnp.all(jnp.isfinite(hb.astype(jnp.float32))))
    assert bool(jnp.all(jnp.isfinite(cb.astype(jnp.float32))))

    print("KERNEL_OK")
</pallas_src>

<mosaic_0001>
module attributes {stable_mosaic.version = 11 : i64} {
  func.func @sru_kernel(%arg0: i32, %arg1: i32, %arg2: memref<2x8x32xf32, #tpu.memory_space<vmem>>, %arg3: memref<2x1x32xf32, #tpu.memory_space<vmem>>, %arg4: memref<32x96xf32, #tpu.memory_space<vmem>>, %arg5: memref<1x64xf32, #tpu.memory_space<vmem>>, %arg6: memref<1x64xf32, #tpu.memory_space<vmem>>, %arg7: memref<1x64xf32, #tpu.memory_space<vmem>>, %arg8: memref<1x32xf32, #tpu.memory_space<vmem>>, %arg9: memref<1x32xf32, #tpu.memory_space<vmem>>, %arg10: memref<2x8x32xf32, #tpu.memory_space<vmem>>, %arg11: memref<2x1x32xf32, #tpu.memory_space<vmem>>, %arg12: memref<2x1x32xf32, #tpu.memory_space<vmem>>) attributes {dimension_semantics = [#tpu.dimension_semantics<parallel>, #tpu.dimension_semantics<arbitrary>], iteration_bounds = array<i64: 1, 2>, scalar_prefetch = 0 : i64, scratch_operands = 1 : i64, tpu.core_type = #tpu.core_type<tc>, window_params = [{transform_indices = @transform_0, window_bounds = array<i64: 2, 8, 32>}, {transform_indices = @transform_1, window_bounds = array<i64: 2, 1, 32>}, {pipeline_mode = #tpu.pipeline_mode<synchronous>, transform_indices = @transform_2, window_bounds = array<i64: 32, 96>}, {pipeline_mode = #tpu.pipeline_mode<synchronous>, transform_indices = @transform_3, window_bounds = array<i64: 1, 64>}, {pipeline_mode = #tpu.pipeline_mode<synchronous>, transform_indices = @transform_4, window_bounds = array<i64: 1, 64>}, {pipeline_mode = #tpu.pipeline_mode<synchronous>, transform_indices = @transform_5, window_bounds = array<i64: 1, 64>}, {pipeline_mode = #tpu.pipeline_mode<synchronous>, transform_indices = @transform_6, window_bounds = array<i64: 1, 32>}, {pipeline_mode = #tpu.pipeline_mode<synchronous>, transform_indices = @transform_7, window_bounds = array<i64: 1, 32>}, {transform_indices = @transform_8, window_bounds = array<i64: 2, 8, 32>}, {transform_indices = @transform_9, window_bounds = array<i64: 2, 1, 32>}]} {
    %c0 = arith.constant 0 : index
    %c0_0 = arith.constant 0 : index
    %c0_1 = arith.constant 0 : index
    %0 = vector.load %arg2[%c0, %c0_0, %c0_1] : memref<2x8x32xf32, #tpu.memory_space<vmem>>, vector<2x8x32xf32>
    %1 = vector.shape_cast %0 : vector<2x8x32xf32> to vector<16x32xf32>
    %c0_2 = arith.constant 0 : index
    %c0_3 = arith.constant 0 : index
    %2 = vector.load %arg4[%c0_2, %c0_3] : memref<32x96xf32, #tpu.memory_space<vmem>>, vector<32x96xf32>
    %cst = arith.constant dense<0.000000e+00> : vector<16x96xf32>
    %3 = tpu.matmul %1, %2, %cst {dimension_numbers = #tpu.dot_dimension_numbers<[1], [0], [0], [1], [0, 0, 1, 1], [], []>} : vector<16x32xf32>, vector<32x96xf32>, vector<16x96xf32> -> vector<16x96xf32>
    %4 = vector.extract_strided_slice %3 {offsets = [0, 0], sizes = [16, 32], strides = [1, 1]} : vector<16x96xf32> to vector<16x32xf32>
    %5 = vector.shape_cast %4 : vector<16x32xf32> to vector<2x8x32xf32>
    %6 = vector.extract_strided_slice %3 {offsets = [0, 32], sizes = [16, 64], strides = [1, 1]} : vector<16x96xf32> to vector<16x64xf32>
    %c0_4 = arith.constant 0 : index
    %c0_5 = arith.constant 0 : index
    %7 = vector.load %arg5[%c0_4, %c0_5] : memref<1x64xf32, #tpu.memory_space<vmem>>, vector<1x64xf32>
    %8 = vector.broadcast %7 : vector<1x64xf32> to vector<16x64xf32>
    %9 = arith.addf %6, %8 : vector<16x64xf32>
    %c0_6 = arith.constant 0 : index
    %c0_7 = arith.constant 0 : index
    %10 = vector.load %arg6[%c0_6, %c0_7] : memref<1x64xf32, #tpu.memory_space<vmem>>, vector<1x64xf32>
    %c0_8 = arith.constant 0 : index
    %c0_9 = arith.constant 0 : index
    %11 = vector.load %arg7[%c0_8, %c0_9] : memref<1x64xf32, #tpu.memory_space<vmem>>, vector<1x64xf32>
    %cst_10 = arith.constant dense<0.000000e+00> : vector<16xf32>
    %12 = vector.multi_reduction <add>, %9, %cst_10 [1] : vector<16x64xf32> to vector<16xf32>
    %13 = vector.shape_cast %12 : vector<16xf32> to vector<16x1xf32>
    %cst_11 = arith.constant 6.400000e+01 : f32
    %14 = vector.broadcast %cst_11 : f32 to vector<16x1xf32>
    %15 = arith.divf %13, %14 : vector<16x1xf32>
    %16 = vector.broadcast %15 : vector<16x1xf32> to vector<16x64xf32>
    %17 = arith.subf %9, %16 : vector<16x64xf32>
    %18 = arith.mulf %17, %17 : vector<16x64xf32>
    %cst_12 = arith.constant dense<0.000000e+00> : vector<16xf32>
    %19 = vector.multi_reduction <add>, %18, %cst_12 [1] : vector<16x64xf32> to vector<16xf32>
    %20 = vector.shape_cast %19 : vector<16xf32> to vector<16x1xf32>
    %cst_13 = arith.constant 6.400000e+01 : f32
    %21 = vector.broadcast %cst_13 : f32 to vector<16x1xf32>
    %22 = arith.divf %20, %21 : vector<16x1xf32>
    %23 = vector.broadcast %15 : vector<16x1xf32> to vector<16x64xf32>
    %24 = arith.subf %9, %23 : vector<16x64xf32>
    %cst_14 = arith.constant 9.99999974E-6 : f32
    %25 = vector.broadcast %cst_14 : f32 to vector<16x1xf32>
    %26 = arith.addf %22, %25 : vector<16x1xf32>
    %27 = math.rsqrt %26 : vector<16x1xf32>
    %28 = vector.broadcast %27 : vector<16x1xf32> to vector<16x64xf32>
    %29 = arith.mulf %24, %28 : vector<16x64xf32>
    %30 = vector.broadcast %10 : vector<1x64xf32> to vector<16x64xf32>
    %31 = arith.mulf %29, %30 : vector<16x64xf32>
    %32 = vector.broadcast %11 : vector<1x64xf32> to vector<16x64xf32>
    %33 = arith.addf %31, %32 : vector<16x64xf32>
    %34 = arith.negf %33 : vector<16x64xf32>
    %35 = math.exp %34 : vector<16x64xf32>
    %cst_15 = arith.constant 1.000000e+00 : f32
    %36 = vector.broadcast %cst_15 : f32 to vector<16x64xf32>
    %37 = arith.addf %36, %35 : vector<16x64xf32>
    %38 = arith.divf %36, %37 : vector<16x64xf32>
    %39 = vector.shape_cast %38 : vector<16x64xf32> to vector<2x8x64xf32>
    %40 = vector.extract_strided_slice %39 {offsets = [0, 0, 0], sizes = [2, 8, 32], strides = [1, 1, 1]} : vector<2x8x64xf32> to vector<2x8x32xf32>
    %41 = vector.extract_strided_slice %39 {offsets = [0, 0, 32], sizes = [2, 8, 32], strides = [1, 1, 1]} : vector<2x8x64xf32> to vector<2x8x32xf32>
    %cst_16 = arith.constant 1.000000e+00 : f32
    %42 = vector.broadcast %cst_16 : f32 to vector<2x8x32xf32>
    %43 = arith.subf %42, %40 : vector<2x8x32xf32>
    %44 = arith.mulf %43, %5 : vector<2x8x32xf32>
    %c0_i32 = arith.constant 0 : i32
    %45 = arith.cmpi eq, %arg1, %c0_i32 : i32
    %46 = arith.extui %45 : i1 to i32
    %c0_i32_17 = arith.constant 0 : i32
    %47 = arith.cmpi ne, %46, %c0_i32_17 : i32
    scf.if %47 {
      %c0_45 = arith.constant 0 : index
      %c0_46 = arith.constant 0 : index
      %c0_47 = arith.constant 0 : index
      %121 = vector.load %arg3[%c0_45, %c0_46, %c0_47] : memref<2x1x32xf32, #tpu.memory_space<vmem>>, vector<2x1x32xf32>
      %c0_48 = arith.constant 0 : index
      %c0_49 = arith.constant 0 : index
      %c0_50 = arith.constant 0 : index
      %122 = vector.load %arg12[%c0_48, %c0_49, %c0_50] : memref<2x1x32xf32, #tpu.memory_space<vmem>>, vector<2x1x32xf32>
      tpu.vector_store %arg12[%c0_48, %c0_49, %c0_50], %121 {strides = array<i32>} : memref<2x1x32xf32, #tpu.memory_space<vmem>>, vector<2x1x32xf32>,
    } else {
    }
    %cst_18 = arith.constant 1.000000e+00 : f32
    %48 = vector.broadcast %cst_18 : f32 to vector<2x1x32xf32>
    %cst_19 = arith.constant 0.000000e+00 : f32
    %49 = vector.broadcast %cst_19 : f32 to vector<2x1x32xf32>
    %50 = vector.extract_strided_slice %40 {offsets = [0, 0, 0], sizes = [2, 7, 32], strides = [1, 1, 1]} : vector<2x8x32xf32> to vector<2x7x32xf32>
    %51 = tpu.concatenate %48, %50 in 1 : vector<2x1x32xf32>, vector<2x7x32xf32> -> vector<2x8x32xf32>
    %52 = vector.extract_strided_slice %44 {offsets = [0, 0, 0], sizes = [2, 7, 32], strides = [1, 1, 1]} : vector<2x8x32xf32> to vector<2x7x32xf32>
    %53 = tpu.concatenate %49, %52 in 1 : vector<2x1x32xf32>, vector<2x7x32xf32> -> vector<2x8x32xf32>
    %54 = arith.mulf %40, %53 : vector<2x8x32xf32>
    %55 = arith.addf %54, %44 : vector<2x8x32xf32>
    %56 = arith.mulf %40, %51 : vector<2x8x32xf32>
    %cst_20 = arith.constant 1.000000e+00 : f32
    %57 = vector.broadcast %cst_20 : f32 to vector<2x2x32xf32>
    %cst_21 = arith.constant 0.000000e+00 : f32
    %58 = vector.broadcast %cst_21 : f32 to vector<2x2x32xf32>
    %59 = vector.extract_strided_slice %56 {offsets = [0, 0, 0], sizes = [2, 6, 32], strides = [1, 1, 1]} : vector<2x8x32xf32> to vector<2x6x32xf32>
    %60 = tpu.concatenate %57, %59 in 1 : vector<2x2x32xf32>, vector<2x6x32xf32> -> vector<2x8x32xf32>
    %61 = vector.extract_strided_slice %55 {offsets = [0, 0, 0], sizes = [2, 6, 32], strides = [1, 1, 1]} : vector<2x8x32xf32> to vector<2x6x32xf32>
    %62 = tpu.concatenate %58, %61 in 1 : vector<2x2x32xf32>, vector<2x6x32xf32> -> vector<2x8x32xf32>
    %63 = arith.mulf %56, %62 : vector<2x8x32xf32>
    %64 = arith.addf %63, %55 : vector<2x8x32xf32>
    %65 = arith.mulf %56, %60 : vector<2x8x32xf32>
    %cst_22 = arith.constant 1.000000e+00 : f32
    %66 = vector.broadcast %cst_22 : f32 to vector<2x4x32xf32>
    %cst_23 = arith.constant 0.000000e+00 : f32
    %67 = vector.broadcast %cst_23 : f32 to vector<2x4x32xf32>
    %68 = vector.extract_strided_slice %65 {offsets = [0, 0, 0], sizes = [2, 4, 32], strides = [1, 1, 1]} : vector<2x8x32xf32> to vector<2x4x32xf32>
    %69 = tpu.concatenate %66, %68 in 1 : vector<2x4x32xf32>, vector<2x4x32xf32> -> vector<2x8x32xf32>
    %70 = vector.extract_strided_slice %64 {offsets = [0, 0, 0], sizes = [2, 4, 32], strides = [1, 1, 1]} : vector<2x8x32xf32> to vector<2x4x32xf32>
    %71 = tpu.concatenate %67, %70 in 1 : vector<2x4x32xf32>, vector<2x4x32xf32> -> vector<2x8x32xf32>
    %72 = arith.mulf %65, %71 : vector<2x8x32xf32>
    %73 = arith.addf %72, %64 : vector<2x8x32xf32>
    %74 = arith.mulf %65, %69 : vector<2x8x32xf32>
    %c0_24 = arith.constant 0 : index
    %c0_25 = arith.constant 0 : index
    %c0_26 = arith.constant 0 : index
    %75 = vector.load %arg12[%c0_24, %c0_25, %c0_26] : memref<2x1x32xf32, #tpu.memory_space<vmem>>, vector<2x1x32xf32>
    %76 = vector.broadcast %75 : vector<2x1x32xf32> to vector<2x8x32xf32>
    %77 = arith.mulf %74, %76 : vector<2x8x32xf32>
    %78 = arith.addf %77, %73 : vector<2x8x32xf32>
    %79 = vector.extract_strided_slice %78 {offsets = [0, 7, 0], sizes = [2, 1, 32], strides = [1, 1, 1]} : vector<2x8x32xf32> to vector<2x1x32xf32>
    %c0_27 = arith.constant 0 : index
    %c0_28 = arith.constant 0 : index
    %c0_29 = arith.constant 0 : index
    %80 = vector.load %arg12[%c0_27, %c0_28, %c0_29] : memref<2x1x32xf32, #tpu.memory_space<vmem>>, vector<2x1x32xf32>
    tpu.vector_store %arg12[%c0_27, %c0_28, %c0_29], %79 {strides = array<i32>} : memref<2x1x32xf32, #tpu.memory_space<vmem>>, vector<2x1x32xf32>,
    %c0_30 = arith.constant 0 : index
    %c0_31 = arith.constant 0 : index
    %81 = vector.load %arg8[%c0_30, %c0_31] : memref<1x32xf32, #tpu.memory_space<vmem>>, vector<1x32xf32>
    %82 = vector.shape_cast %81 : vector<1x32xf32> to vector<1x1x32xf32>
    %c0_32 = arith.constant 0 : index
    %c0_33 = arith.constant 0 : index
    %83 = vector.load %arg9[%c0_32, %c0_33] : memref<1x32xf32, #tpu.memory_space<vmem>>, vector<1x32xf32>
    %84 = vector.shape_cast %83 : vector<1x32xf32> to vector<1x1x32xf32>
    %cst_34 = arith.constant dense<0.000000e+00> : vector<2x8xf32>
    %85 = vector.multi_reduction <add>, %78, %cst_34 [2] : vector<2x8x32xf32> to vector<2x8xf32>
    %86 = vector.shape_cast %85 : vector<2x8xf32> to vector<2x8x1xf32>
    %cst_35 = arith.constant 3.200000e+01 : f32
    %87 = vector.broadcast %cst_35 : f32 to vector<2x8x1xf32>
    %88 = arith.divf %86, %87 : vector<2x8x1xf32>
    %89 = vector.broadcast %88 : vector<2x8x1xf32> to vector<2x8x32xf32>
    %90 = arith.subf %78, %89 : vector<2x8x32xf32>
    %91 = arith.mulf %90, %90 : vector<2x8x32xf32>
    %cst_36 = arith.constant dense<0.000000e+00> : vector<2x8xf32>
    %92 = vector.multi_reduction <add>, %91, %cst_36 [2] : vector<2x8x32xf32> to vector<2x8xf32>
    %93 = vector.shape_cast %92 : vector<2x8xf32> to vector<2x8x1xf32>
    %cst_37 = arith.constant 3.200000e+01 : f32
    %94 = vector.broadcast %cst_37 : f32 to vector<2x8x1xf32>
    %95 = arith.divf %93, %94 : vector<2x8x1xf32>
    %96 = vector.broadcast %88 : vector<2x8x1xf32> to vector<2x8x32xf32>
    %97 = arith.subf %78, %96 : vector<2x8x32xf32>
    %cst_38 = arith.constant 9.99999974E-6 : f32
    %98 = vector.broadcast %cst_38 : f32 to vector<2x8x1xf32>
    %99 = arith.addf %95, %98 : vector<2x8x1xf32>
    %100 = math.rsqrt %99 : vector<2x8x1xf32>
    %101 = vector.broadcast %100 : vector<2x8x1xf32> to vector<2x8x32xf32>
    %102 = arith.mulf %97, %101 : vector<2x8x32xf32>
    %103 = vector.broadcast %82 : vector<1x1x32xf32> to vector<2x8x32xf32>
    %104 = arith.mulf %102, %103 : vector<2x8x32xf32>
    %105 = vector.broadcast %84 : vector<1x1x32xf32> to vector<2x8x32xf32>
    %106 = arith.addf %104, %105 : vector<2x8x32xf32>
    %107 = arith.negf %106 : vector<2x8x32xf32>
    %108 = math.exp %107 : vector<2x8x32xf32>
    %cst_39 = arith.constant 1.000000e+00 : f32
    %109 = vector.broadcast %cst_39 : f32 to vector<2x8x32xf32>
    %110 = arith.addf %109, %108 : vector<2x8x32xf32>
    %111 = arith.divf %109, %110 : vector<2x8x32xf32>
    %112 = arith.mulf %41, %111 : vector<2x8x32xf32>
    %cst_40 = arith.constant 1.000000e+00 : f32
    %113 = vector.broadcast %cst_40 : f32 to vector<2x8x32xf32>
    %114 = arith.subf %113, %41 : vector<2x8x32xf32>
    %115 = arith.mulf %114, %0 : vector<2x8x32xf32>
    %116 = arith.addf %112, %115 : vector<2x8x32xf32>
    %c0_41 = arith.constant 0 : index
    %c0_42 = arith.constant 0 : index
    %c0_43 = arith.constant 0 : index
    %117 = vector.load %arg10[%c0_41, %c0_42, %c0_43] : memref<2x8x32xf32, #tpu.memory_space<vmem>>, vector<2x8x32xf32>
    tpu.vector_store %arg10[%c0_41, %c0_42, %c0_43], %116 {strides = array<i32>} : memref<2x8x32xf32, #tpu.memory_space<vmem>>, vector<2x8x32xf32>,
    %c1_i32 = arith.constant 1 : i32
    %118 = arith.cmpi eq, %arg1, %c1_i32 : i32
    %119 = arith.extui %118 : i1 to i32
    %c0_i32_44 = arith.constant 0 : i32
    %120 = arith.cmpi ne, %119, %c0_i32_44 : i32
    scf.if %120 {
      %c0_45 = arith.constant 0 : index
      %c0_46 = arith.constant 0 : index
      %c0_47 = arith.constant 0 : index
      %121 = vector.load %arg12[%c0_45, %c0_46, %c0_47] : memref<2x1x32xf32, #tpu.memory_space<vmem>>, vector<2x1x32xf32>
      %c0_48 = arith.constant 0 : index
      %c0_49 = arith.constant 0 : index
      %c0_50 = arith.constant 0 : index
      %122 = vector.load %arg11[%c0_48, %c0_49, %c0_50] : memref<2x1x32xf32, #tpu.memory_space<vmem>>, vector<2x1x32xf32>
      tpu.vector_store %arg11[%c0_48, %c0_49, %c0_50], %121 {strides = array<i32>} : memref<2x1x32xf32, #tpu.memory_space<vmem>>, vector<2x1x32xf32>,
    } else {
    }
    return
  }
  func.func @transform_0(%arg0: i32, %arg1: i32) -> (i32, i32, i32) {
    %c0_i32 = arith.constant 0 : i32
    %c0_i32_0 = arith.constant 0 : i32
    return %arg0, %arg1, %c0_i32 : i32, i32, i32
  }
  func.func @transform_1(%arg0: i32, %arg1: i32) -> (i32, i32, i32) {
    %c0_i32 = arith.constant 0 : i32
    %c0_i32_0 = arith.constant 0 : i32
    %c0_i32_1 = arith.constant 0 : i32
    return %arg0, %c0_i32, %c0_i32_0 : i32, i32, i32
  }
  func.func @transform_2(%arg0: i32, %arg1: i32) -> (i32, i32) {
    %c0_i32 = arith.constant 0 : i32
    %c0_i32_0 = arith.constant 0 : i32
    %c0_i32_1 = arith.constant 0 : i32
    return %c0_i32, %c0_i32_0 : i32, i32
  }
  func.func @transform_3(%arg0: i32, %arg1: i32) -> (i32, i32) {
    %c0_i32 = arith.constant 0 : i32
    %c0_i32_0 = arith.constant 0 : i32
    %c0_i32_1 = arith.constant 0 : i32
    return %c0_i32, %c0_i32_0 : i32, i32
  }
  func.func @transform_4(%arg0: i32, %arg1: i32) -> (i32, i32) {
    %c0_i32 = arith.constant 0 : i32
    %c0_i32_0 = arith.constant 0 : i32
    %c0_i32_1 = arith.constant 0 : i32
    return %c0_i32, %c0_i32_0 : i32, i32
  }
  func.func @transform_5(%arg0: i32, %arg1: i32) -> (i32, i32) {
    %c0_i32 = arith.constant 0 : i32
    %c0_i32_0 = arith.constant 0 : i32
    %c0_i32_1 = arith.constant 0 : i32
    return %c0_i32, %c0_i32_0 : i32, i32
  }
  func.func @transform_6(%arg0: i32, %arg1: i32) -> (i32, i32) {
    %c0_i32 = arith.constant 0 : i32
    %c0_i32_0 = arith.constant 0 : i32
    %c0_i32_1 = arith.constant 0 : i32
    return %c0_i32, %c0_i32_0 : i32, i32
  }
  func.func @transform_7(%arg0: i32, %arg1: i32) -> (i32, i32) {
    %c0_i32 = arith.constant 0 : i32
    %c0_i32_0 = arith.constant 0 : i32
    %c0_i32_1 = arith.constant 0 : i32
    return %c0_i32, %c0_i32_0 : i32, i32
  }
  func.func @transform_8(%arg0: i32, %arg1: i32) -> (i32, i32, i32) {
    %c0_i32 = arith.constant 0 : i32
    %c0_i32_0 = arith.constant 0 : i32
    return %arg0, %arg1, %c0_i32 : i32, i32, i32
  }
  func.func @transform_9(%arg0: i32, %arg1: i32) -> (i32, i32, i32) {
    %c0_i32 = arith.constant 0 : i32
    %c0_i32_0 = arith.constant 0 : i32
    %c0_i32_1 = arith.constant 0 : i32
    return %arg0, %c0_i32, %c0_i32_0 : i32, i32, i32
  }
}

</mosaic_0001>

<llo_original>
// kernel: tpu_custom_call.1
$region0: #{tpu_custom_call.1}
  #allocation0 [shape = 'u32[]', space=smem, size = 0x4, offset = 0x4, fixed_abs, tag = 'smem constant byte address 0x4 - core index']
  #allocation1 [shape = 'u32[144,128]{1,0:T(1,128)}', space=vmem, size = 0x12000, scoped, tag = 'internal scratch']
  #allocation2 [shape = 'f32[2,1,32]{2,1,0:T(1,128)}', space=vmem, size = 0x400, scoped, tag = 'scratch operand']
  %s0 = inlined_call_operand.hbm [shape: f32[2,16,32], index: 0, kind: input, shape index: {}]
  %s1 = inlined_call_operand.vmem [shape: f32[2,1,32], index: 1, kind: input, shape index: {}]
  %s2 = inlined_call_operand.hbm [shape: f32[32,96], index: 2, kind: input, shape index: {}]
  %s3 = inlined_call_operand.vmem [shape: f32[1,64], index: 3, kind: input, shape index: {}]
  %s4 = inlined_call_operand.vmem [shape: f32[1,64], index: 4, kind: input, shape index: {}]
  %s5 = inlined_call_operand.vmem [shape: f32[1,64], index: 5, kind: input, shape index: {}]
  %s6 = inlined_call_operand.vmem [shape: f32[1,32], index: 6, kind: input, shape index: {}]
  %s7 = inlined_call_operand.vmem [shape: f32[1,32], index: 7, kind: input, shape index: {}]
  %s8 = inlined_call_operand.hbm [shape: f32[2,16,32], index: 8, kind: output, shape index: {0}]
  %s9 = inlined_call_operand.hbm [shape: f32[2,1,32], index: 9, kind: output, shape index: {1}]
  %10 = xla_tuple %s8, %s9
  %s11 = sld [smem:[#allocation0]]
  $region89: #{tpu_custom_call.1} parent=0
    _
  %s13 = ssub.s32 1, %s11
  %s14 = scalar_select 0, %s13, %s11
  $region1: #{tpu_custom_call.1} parent=0
    #allocation3 [shape = 'u8[16384]{0}', space=vmem, size = 0x4000, scoped, tag = 'input window, operand 0']
    #allocation4 [shape = 's32[2]{0}', space=sflag, size = 0x8, scoped, tag = 'scoped memory for tpu_custom_call.1']
    #allocation5 [shape = 's32[2]{0}', space=sflag, size = 0x8, scoped, tag = 'scoped memory for tpu_custom_call.1']
    #allocation6 [shape = 'u8[16384]{0}', space=vmem, size = 0x4000, scoped, tag = 'input window, operand 2, single buffered']
    #allocation7 [shape = 's32[1]{0}', space=sflag, size = 0x4, scoped, tag = 'scoped memory for tpu_custom_call.1']
    #allocation8 [shape = 'u8[16384]{0}', space=vmem, size = 0x4000, scoped, tag = 'output window, operand 0']
    #allocation9 [shape = 'u8[1024]{0}', space=vmem, size = 0x400, scoped, tag = 'output window, operand 1, single buffered']
    #allocation10 [shape = 's32[1]{0}', space=sflag, size = 0x4, scoped, tag = 'scoped memory for tpu_custom_call.1']
    %15 = vsyncpa [#allocation4], 0
    %s16 = scalar_lea.sflag [#allocation4], 1
    %17 = vsyncpa %s16, 0
    %18 = vsyncpa [#allocation7], 0
    %19 = vsyncpa [#allocation5], 0
    %s20 = scalar_lea.sflag [#allocation5], 1
    %21 = vsyncpa %s20, 0
    %22 = vsyncpa [#allocation10], 0
    loop: start=0, step=1, limit=4
    $region2: #{tpu_custom_call.1} parent=1 // loop_pre_header
      _
    $region3: #{tpu_custom_call.1} parent=1 // loop_header
      %s24 = sphi 0, %s28
      %p25 = scmp.ge.s32.totalorder %s24, 4
      %s31 = sphi 0, %s43
      %s32 = sphi 0, %s39
      %s33 = sphi 0, %s31
      %s34 = sphi 0, %s32
      %s35 = sphi 0, %s33
      %s36 = sphi 0, %s34
      %s48 = sphi 0, %s50
      %s51 = sphi 0, %s48
      %s52 = sphi 0, %s51
      %s68 = sphi 0, %s52
      %s74 = sphi 0, %s76
      %s77 = sphi 0, %s74
      %s78 = sphi 0, %s77
      %s94 = sphi 0, %s78
      %s98 = sphi 0, %s98
      %s100 = sphi 0, %s98
      %s101 = sphi 0, %s100
      %s115 = sphi 0, %s101
      %s119 = sphi 0, %s119
      %s121 = sphi 0, %s119
      %s122 = sphi 0, %s121
      %s136 = sphi 0, %s122
      %s140 = sphi 0, %s140
      %s142 = sphi 0, %s140
      %s143 = sphi 0, %s142
      %s157 = sphi 0, %s143
      %s161 = sphi 0, %s161
      %s163 = sphi 0, %s161
      %s164 = sphi 0, %s163
      %s178 = sphi 0, %s164
      %s182 = sphi 0, %s182
      %s184 = sphi 0, %s182
      %s185 = sphi 0, %s184
      %s199 = sphi 0, %s185
      %s203 = sphi 0, %s203
      %s205 = sphi 0, %s203
      %s206 = sphi 0, %s205
      %s220 = sphi 0, %s206
      %s228 = sphi 0, %s230
      %s231 = sphi 0, %s228
      %s232 = sphi 0, %s231
      %s248 = sphi 0, %s232
      %s254 = sphi 0, %s256
      %s257 = sphi 0, %s254
      %s258 = sphi 0, %s257
      %s274 = sphi 0, %s258
    $region4: #{tpu_custom_call.1} parent=1 // loop_header_branch
      %27 = sbr.rel (%p25) target = $region8
    $region5: #{tpu_custom_call.1} parent=1 // loop_body
      %s29 = ssub.s32 %s24, 1
      %s30 = ssub.s32 %s24, 2
      %s37 = sadd.s32 1, %s32
      %p38 = scmp.ge.s32.totalorder %s37, 2
      %s39 = scalar_select %p38, 0, %s37
      %s40 = sadd.s32 1, %s31
      %s41 = scalar_select %p38, %s40, %s31
      %p42 = scmp.ge.s32.totalorder %s41, 1
      %s43 = scalar_select %p42, 0, %s41
      %s44 = ssub.s32 %s31, %s43
      %s45 = ssub.s32 %s32, %s39
      %s46 = sor.u32 %s44, %s45
      %p47 = scmp.eq.s32.totalorder %s46, 0
      %s49 = sadd.s32 %s48, 1
      %s50 = scalar_select %p47, %s48, %s49
      %p53 = pneg %p47
      %p54 = scmp.eq.s32.totalorder %s24, 1
      %p55 = por %p53, %p54
      %p56 = scmp.ne.s32.totalorder %s48, %s51
      %p57 = scmp.eq.s32.totalorder %s24, 0
      %p58 = por %p56, %p57
      %p59 = scmp.ne.s32.totalorder %s48, %s51
      %p60 = scmp.eq.s32.totalorder %s29, 1
      %p61 = por %p59, %p60
      %p62 = scmp.ne.s32.totalorder %s51, %s52
      %p63 = scmp.eq.s32.totalorder %s29, 0
      %p64 = por %p62, %p63
      %p65 = scmp.ne.s32.totalorder %s51, %s52
      %p66 = scmp.eq.s32.totalorder %s30, 1
      %p67 = por %p65, %p66
      %p69 = scmp.ne.s32.totalorder %s52, %s68
      %p70 = scmp.eq.s32.totalorder %s30, 0
      %p71 = por %p69, %p70
      %s72 = ssub.s32 %s31, %s43
      %p73 = scmp.eq.s32.totalorder %s72, 0
      %s75 = sadd.s32 %s74, 1
      %s76 = scalar_select %p73, %s74, %s75
      %p79 = pneg %p73
      %p80 = scmp.eq.s32.totalorder %s24, 1
      %p81 = por %p79, %p80
      %p82 = scmp.ne.s32.totalorder %s74, %s77
      %p83 = scmp.eq.s32.totalorder %s24, 0
      %p84 = por %p82, %p83
      %p85 = scmp.ne.s32.totalorder %s74, %s77
      %p86 = scmp.eq.s32.totalorder %s29, 1
      %p87 = por %p85, %p86
      %p88 = scmp.ne.s32.totalorder %s77, %s78
      %p89 = scmp.eq.s32.totalorder %s29, 0
      %p90 = por %p88, %p89
      %p91 = scmp.ne.s32.totalorder %s77, %s78
      %p92 = scmp.eq.s32.totalorder %s30, 1
      %p93 = por %p91, %p92
      %p95 = scmp.ne.s32.totalorder %s78, %s94
      %p96 = scmp.eq.s32.totalorder %s30, 0
      %p97 = por %p95, %p96
      %s99 = sadd.s32 %s98, 1
      %p102 = scmp.eq.s32.totalorder %s24, 1
      %p103 = scmp.ne.s32.totalorder %s98, %s100
      %p104 = scmp.eq.s32.totalorder %s24, 0
      %p105 = por %p103, %p104
      %p106 = scmp.ne.s32.totalorder %s98, %s100
      %p107 = scmp.eq.s32.totalorder %s29, 1
      %p108 = por %p106, %p107
      %p109 = scmp.ne.s32.totalorder %s100, %s101
      %p110 = scmp.eq.s32.totalorder %s29, 0
      %p111 = por %p109, %p110
      %p112 = scmp.ne.s32.totalorder %s100, %s101
      %p113 = scmp.eq.s32.totalorder %s30, 1
      %p114 = por %p112, %p113
      %p116 = scmp.ne.s32.totalorder %s101, %s115
      %p117 = scmp.eq.s32.totalorder %s30, 0
      %p118 = por %p116, %p117
      %s120 = sadd.s32 %s119, 1
      %p123 = scmp.eq.s32.totalorder %s24, 1
      %p124 = scmp.ne.s32.totalorder %s119, %s121
      %p125 = scmp.eq.s32.totalorder %s24, 0
      %p126 = por %p124, %p125
      %p127 = scmp.ne.s32.totalorder %s119, %s121
      %p128 = scmp.eq.s32.totalorder %s29, 1
      %p129 = por %p127, %p128
      %p130 = scmp.ne.s32.totalorder %s121, %s122
      %p131 = scmp.eq.s32.totalorder %s29, 0
      %p132 = por %p130, %p131
      %p133 = scmp.ne.s32.totalorder %s121, %s122
      %p134 = scmp.eq.s32.totalorder %s30, 1
      %p135 = por %p133, %p134
      %p137 = scmp.ne.s32.totalorder %s122, %s136
      %p138 = scmp.eq.s32.totalorder %s30, 0
      %p139 = por %p137, %p138
      %s141 = sadd.s32 %s140, 1
      %p144 = scmp.eq.s32.totalorder %s24, 1
      %p145 = scmp.ne.s32.totalorder %s140, %s142
      %p146 = scmp.eq.s32.totalorder %s24, 0
      %p147 = por %p145, %p146
      %p148 = scmp.ne.s32.totalorder %s140, %s142
      %p149 = scmp.eq.s32.totalorder %s29, 1
      %p150 = por %p148, %p149
      %p151 = scmp.ne.s32.totalorder %s142, %s143
      %p152 = scmp.eq.s32.totalorder %s29, 0
      %p153 = por %p151, %p152
      %p154 = scmp.ne.s32.totalorder %s142, %s143
      %p155 = scmp.eq.s32.totalorder %s30, 1
      %p156 = por %p154, %p155
      %p158 = scmp.ne.s32.totalorder %s143, %s157
      %p159 = scmp.eq.s32.totalorder %s30, 0
      %p160 = por %p158, %p159
      %s162 = sadd.s32 %s161, 1
      %p165 = scmp.eq.s32.totalorder %s24, 1
      %p166 = scmp.ne.s32.totalorder %s161, %s163
      %p167 = scmp.eq.s32.totalorder %s24, 0
      %p168 = por %p166, %p167
      %p169 = scmp.ne.s32.totalorder %s161, %s163
      %p170 = scmp.eq.s32.totalorder %s29, 1
      %p171 = por %p169, %p170
      %p172 = scmp.ne.s32.totalorder %s163, %s164
      %p173 = scmp.eq.s32.totalorder %s29, 0
      %p174 = por %p172, %p173
      %p175 = scmp.ne.s32.totalorder %s163, %s164
      %p176 = scmp.eq.s32.totalorder %s30, 1
      %p177 = por %p175, %p176
      %p179 = scmp.ne.s32.totalorder %s164, %s178
      %p180 = scmp.eq.s32.totalorder %s30, 0
      %p181 = por %p179, %p180
      %s183 = sadd.s32 %s182, 1
      %p186 = scmp.eq.s32.totalorder %s24, 1
      %p187 = scmp.ne.s32.totalorder %s182, %s184
      %p188 = scmp.eq.s32.totalorder %s24, 0
      %p189 = por %p187, %p188
      %p190 = scmp.ne.s32.totalorder %s182, %s184
      %p191 = scmp.eq.s32.totalorder %s29, 1
      %p192 = por %p190, %p191
      %p193 = scmp.ne.s32.totalorder %s184, %s185
      %p194 = scmp.eq.s32.totalorder %s29, 0
      %p195 = por %p193, %p194
      %p196 = scmp.ne.s32.totalorder %s184, %s185
      %p197 = scmp.eq.s32.totalorder %s30, 1
      %p198 = por %p196, %p197
      %p200 = scmp.ne.s32.totalorder %s185, %s199
      %p201 = scmp.eq.s32.totalorder %s30, 0
      %p202 = por %p200, %p201
      %s204 = sadd.s32 %s203, 1
      %p207 = scmp.eq.s32.totalorder %s24, 1
      %p208 = scmp.ne.s32.totalorder %s203, %s205
      %p209 = scmp.eq.s32.totalorder %s24, 0
      %p210 = por %p208, %p209
      %p211 = scmp.ne.s32.totalorder %s203, %s205
      %p212 = scmp.eq.s32.totalorder %s29, 1
      %p213 = por %p211, %p212
      %p214 = scmp.ne.s32.totalorder %s205, %s206
      %p215 = scmp.eq.s32.totalorder %s29, 0
      %p216 = por %p214, %p215
      %p217 = scmp.ne.s32.totalorder %s205, %s206
      %p218 = scmp.eq.s32.totalorder %s30, 1
      %p219 = por %p217, %p218
      %p221 = scmp.ne.s32.totalorder %s206, %s220
      %p222 = scmp.eq.s32.totalorder %s30, 0
      %p223 = por %p221, %p222
      %s224 = ssub.s32 %s31, %s43
      %s225 = ssub.s32 %s32, %s39
      %s226 = sor.u32 %s224, %s225
      %p227 = scmp.eq.s32.totalorder %s226, 0
      %s229 = sadd.s32 %s228, 1
      %s230 = scalar_select %p227, %s228, %s229
      %p233 = pneg %p227
      %p234 = scmp.eq.s32.totalorder %s24, 1
      %p235 = por %p233, %p234
      %p236 = scmp.ne.s32.totalorder %s228, %s231
      %p237 = scmp.eq.s32.totalorder %s24, 0
      %p238 = por %p236, %p237
      %p239 = scmp.ne.s32.totalorder %s228, %s231
      %p240 = scmp.eq.s32.totalorder %s29, 1
      %p241 = por %p239, %p240
      %p242 = scmp.ne.s32.totalorder %s231, %s232
      %p243 = scmp.eq.s32.totalorder %s29, 0
      %p244 = por %p242, %p243
      %p245 = scmp.ne.s32.totalorder %s231, %s232
      %p246 = scmp.eq.s32.totalorder %s30, 1
      %p247 = por %p245, %p246
      %p249 = scmp.ne.s32.totalorder %s232, %s248
      %p250 = scmp.eq.s32.totalorder %s30, 0
      %p251 = por %p249, %p250
      %s252 = ssub.s32 %s31, %s43
      %p253 = scmp.eq.s32.totalorder %s252, 0
      %s255 = sadd.s32 %s254, 1
      %s256 = scalar_select %p253, %s254, %s255
      %p259 = pneg %p253
      %p260 = scmp.eq.s32.totalorder %s24, 1
      %p261 = por %p259, %p260
      %p262 = scmp.ne.s32.totalorder %s254, %s257
      %p263 = scmp.eq.s32.totalorder %s24, 0
      %p264 = por %p262, %p263
      %p265 = scmp.ne.s32.totalorder %s254, %s257
      %p266 = scmp.eq.s32.totalorder %s29, 1
      %p267 = por %p265, %p266
      %p268 = scmp.ne.s32.totalorder %s257, %s258
      %p269 = scmp.eq.s32.totalorder %s29, 0
      %p270 = por %p268, %p269
      %p271 = scmp.ne.s32.totalorder %s257, %s258
      %p272 = scmp.eq.s32.totalorder %s30, 1
      %p273 = por %p271, %p272
      %p275 = scmp.ne.s32.totalorder %s258, %s274
      %p276 = scmp.eq.s32.totalorder %s30, 0
      %p277 = por %p275, %p276
      %p278 = scmp.le.s32.totalorder 1, %s24
      %p279 = scmp.lt.s32.totalorder %s24, 3
      %p280 = pnand %p278, %p279
      %p281 = pneg %p280
      // Predicated region
      $region9: #{tpu_custom_call.1} parent=5 // pred_check
        _
      $region10: #{tpu_custom_call.1} parent=5 // pred_check_branch
        %283 = sbr.rel (%p280) target = $region12
      $region11: #{tpu_custom_call.1} parent=5 // pred_region
        %s284 = ssub.s32 %s24, 1
        // Predicated region
        $region13: #{tpu_custom_call.1} parent=11 // pred_check
          %p285 = pneg %p90
        $region14: #{tpu_custom_call.1} parent=11 // pred_check_branch
          %287 = sbr.rel (%p285) target = $region16
        $region15: #{tpu_custom_call.1} parent=11 // pred_region
          %s288 = smul.u32 2, %s33
          %p289 = scmp.lt.s32.totalorder %s288, 1
          %s290 = scalar_select %p289, %s288, 1
          %s291 = scalar_lea.vmem %s1, %s290
          %s292 = smul.u32 2, %s33
        $region16: #{tpu_custom_call.1} parent=11 // pred_fallthru
          _
        // Predicated region
        $region17: #{tpu_custom_call.1} parent=11 // pred_check
          %p293 = pneg %p111
        $region18: #{tpu_custom_call.1} parent=11 // pred_check_branch
          %295 = sbr.rel (%p293) target = $region20
        $region19: #{tpu_custom_call.1} parent=11 // pred_region
          %s297 = ssub.s32 512, 512
          %298 = vsyncadd [#allocation7], %s297
          %s299 = sshll.u32 [#allocation6], 4
          %s300 = int_to_ptr.vmem [resolvable:$true] %s299
          %305 = dma.hbm_to_vmem [thread:$0]  %s2, 512, %s300, [#allocation7], 128, 128, 8
        $region20: #{tpu_custom_call.1} parent=11 // pred_fallthru
          _
        // Predicated region
        $region21: #{tpu_custom_call.1} parent=11 // pred_check
          %p306 = pneg %p132
        $region22: #{tpu_custom_call.1} parent=11 // pred_check_branch
          %308 = sbr.rel (%p306) target = $region24
        $region23: #{tpu_custom_call.1} parent=11 // pred_region
          _
        $region24: #{tpu_custom_call.1} parent=11 // pred_fallthru
          _
        // Predicated region
        $region25: #{tpu_custom_call.1} parent=11 // pred_check
          %p309 = pneg %p153
        $region26: #{tpu_custom_call.1} parent=11 // pred_check_branch
          %311 = sbr.rel (%p309) target = $region28
        $region27: #{tpu_custom_call.1} parent=11 // pred_region
          _
        $region28: #{tpu_custom_call.1} parent=11 // pred_fallthru
          _
        // Predicated region
        $region29: #{tpu_custom_call.1} parent=11 // pred_check
          %p312 = pneg %p174
        $region30: #{tpu_custom_call.1} parent=11 // pred_check_branch
          %314 = sbr.rel (%p312) target = $region32
        $region31: #{tpu_custom_call.1} parent=11 // pred_region
          _
        $region32: #{tpu_custom_call.1} parent=11 // pred_fallthru
          _
        // Predicated region
        $region33: #{tpu_custom_call.1} parent=11 // pred_check
          %p315 = pneg %p195
        $region34: #{tpu_custom_call.1} parent=11 // pred_check_branch
          %317 = sbr.rel (%p315) target = $region36
        $region35: #{tpu_custom_call.1} parent=11 // pred_region
          _
        $region36: #{tpu_custom_call.1} parent=11 // pred_fallthru
          _
        // Predicated region
        $region37: #{tpu_custom_call.1} parent=11 // pred_check
          %p318 = pneg %p216
        $region38: #{tpu_custom_call.1} parent=11 // pred_check_branch
          %320 = sbr.rel (%p318) target = $region40
        $region39: #{tpu_custom_call.1} parent=11 // pred_region
          _
        $region40: #{tpu_custom_call.1} parent=11 // pred_fallthru
          _
      $region12: #{tpu_custom_call.1} parent=5 // pred_fallthru
        _
      %p321 = scmp.lt.s32.totalorder %s24, 2
      // Predicated region
      $region41: #{tpu_custom_call.1} parent=5 // pred_check
        %p322 = pneg %p321
      $region42: #{tpu_custom_call.1} parent=5 // pred_check_branch
        %324 = sbr.rel (%p322) target = $region44
      $region43: #{tpu_custom_call.1} parent=5 // pred_region
        // Predicated region
        $region45: #{tpu_custom_call.1} parent=43 // pred_check
          %p325 = pneg %p58
        $region46: #{tpu_custom_call.1} parent=43 // pred_check_branch
          %327 = sbr.rel (%p325) target = $region48
        $region47: #{tpu_custom_call.1} parent=43 // pred_region
          %s328 = sand.u32 %s48, 1
          %s329 = scalar_lea.sflag [#allocation4], %s328
          %s330 = sand.u32 %s48, 1
          %s331 = smul.addr %s330, 16
          %s332 = scalar_lea.vmem [#allocation3], %s331
          %s333 = smul.u32 2, %s31
          %s335 = ssub.s32 256, 256
          %336 = vsyncadd %s329, %s335
          %s337 = smul.addr %s333, 2
          %s338 = sadd.s32 %s32, %s337
          %s339 = smul.addr %s338, 128
          %s340 = scalar_lea.hbm %s0, %s339
          %s341 = sshll.u32 %s332, 4
          %s342 = int_to_ptr.vmem [resolvable:$true] %s341
          %347 = dma.hbm_to_vmem [thread:$0]  %s340, 256, %s342, %s329, 256, 128, 8
        $region48: #{tpu_custom_call.1} parent=43 // pred_fallthru
          _
      $region44: #{tpu_custom_call.1} parent=5 // pred_fallthru
        _
      %p348 = scmp.le.s32.totalorder 1, %s24
      %p349 = scmp.lt.s32.totalorder %s24, 3
      %p350 = pnand %p348, %p349
      %p351 = pneg %p350
      // Predicated region
      $region49: #{tpu_custom_call.1} parent=5 // pred_check
        _
      $region50: #{tpu_custom_call.1} parent=5 // pred_check_branch
        %353 = sbr.rel (%p350) target = $region52
      $region51: #{tpu_custom_call.1} parent=5 // pred_region
        %s354 = ssub.s32 %s24, 1
        %s355 = sand.u32 %s51, 1
        %s356 = scalar_lea.sflag [#allocation4], %s355
        %s357 = sand.u32 %s51, 1
        %s358 = smul.addr %s357, 16
        %s359 = scalar_lea.vmem [#allocation3], %s358
        // Predicated region
        $region53: #{tpu_custom_call.1} parent=51 // pred_check
          %p360 = pneg %p64
        $region54: #{tpu_custom_call.1} parent=51 // pred_check_branch
          %362 = sbr.rel (%p360) target = $region56
        $region55: #{tpu_custom_call.1} parent=51 // pred_region
          %363 = dma.done %s356, 256
        $region56: #{tpu_custom_call.1} parent=51 // pred_fallthru
          _
        // Predicated region
        $region57: #{tpu_custom_call.1} parent=51 // pred_check
          %p364 = pneg %p111
        $region58: #{tpu_custom_call.1} parent=51 // pred_check_branch
          %366 = sbr.rel (%p364) target = $region60
        $region59: #{tpu_custom_call.1} parent=51 // pred_region
          %367 = dma.done [#allocation7], 512
        $region60: #{tpu_custom_call.1} parent=51 // pred_fallthru
          _
        %s368 = sand.u32 %s51, 1
        %s369 = scalar_lea.sflag [#allocation4], %s368
        %s370 = sand.u32 %s51, 1
        %s371 = smul.addr %s370, 16
        %s372 = scalar_lea.vmem [#allocation3], %s371
        %p373 = pneg %p64
        %p374 = pneg %p61
        %s375 = smul.u32 2, %s33
        %p376 = scmp.lt.s32.totalorder %s375, 1
        %s377 = scalar_select %p376, %s375, 1
        %s378 = scalar_lea.vmem %s1, %s377
        %p379 = pneg %p90
        %p380 = pneg %p87
        %p381 = pneg %p111
        %p382 = pneg %p108
        %p383 = pneg %p132
        %p384 = pneg %p129
        %p385 = pneg %p153
        %p386 = pneg %p150
        %p387 = pneg %p174
        %p388 = pneg %p171
        %p389 = pneg %p195
        %p390 = pneg %p192
        %p391 = pneg %p216
        %p392 = pneg %p213
        %p393 = pneg %p244
        %p394 = pneg %p241
        %s395 = sand.u32 %s231, 1
        %s396 = scalar_lea.sflag [#allocation5], %s395
        %s397 = sand.u32 %s231, 1
        %s398 = smul.addr %s397, 16
        %s399 = scalar_lea.vmem [#allocation8], %s398
        %p400 = pneg %p270
        %p401 = pneg %p267
        %s402 = smul.u32 2, %s33
        %s403 = smul.u32 2, %s33
        %p404 = scmp.lt.s32.totalorder %s403, 1
        %s405 = scalar_select %p404, %s403, 1
        %s406 = scalar_lea.vmem %s1, %s405
        %s407 = smul.u32 2, %s33
        %s408 = smul.u32 2, %s33
        %s409 = smul.u32 2, %s33
        %v410 = vld [vmem:[%s359] sm:$0xff]
        %v411 = vld [vmem:[%s359 + $0x8] sm:$0xff]
        %v412 = vld [vmem:[#allocation6] sm:$0xff]
        %v413 = vld [vmem:[#allocation6 + $0x8] sm:$0xff]
        %v414 = vld [vmem:[#allocation6 + $0x10] sm:$0xff]
        %v415 = vld [vmem:[#allocation6 + $0x18] sm:$0xff]
        %vm416 = vcmask 261120
        %v418 = vsel %vm416, %v410, 0
        %v421 = vsel %vm416, %v411, 0
        %423 = vmatprep.subr.mxu0 0.0
        %424 = vmatpush1.msra.mxu0 %v412
        %425 = vmatprep.subr.mxu0 0.0
        %426 = vmatpush1.msra.mxu0 %v413
        %427 = vmatprep.subr.mxu0 0.0
        %428 = vmatpush1.msra.mxu0 %v414
        %429 = vmatprep.subr.mxu0 0.0
        %430 = vmatpush1.msra.mxu0 %v415
        %431 = vmatprep.subr.mxu0 0.0
        %432 = vmatpush1.msra.mxu0 0.0
        %433 = vmatprep.subr.mxu0 0.0
        %434 = vmatpush1.msra.mxu0 0.0
        %435 = vmatprep.subr.mxu0 0.0
        %436 = vmatpush1.msra.mxu0 0.0
        %437 = vmatprep.subr.mxu0 0.0
        %438 = vmatpush1.msra.mxu0 0.0
        %439 = vmatprep.subr.mxu0 0.0
        %440 = vmatpush1.msra.mxu0 0.0
        %441 = vmatprep.subr.mxu0 0.0
        %442 = vmatpush1.msra.mxu0 0.0
        %443 = vmatprep.subr.mxu0 0.0
        %444 = vmatpush1.msra.mxu0 0.0
        %445 = vmatprep.subr.mxu0 0.0
        %446 = vmatpush1.msra.mxu0 0.0
        %447 = vmatprep.subr.mxu0 0.0
        %448 = vmatpush1.msra.mxu0 0.0
        %449 = vmatprep.subr.mxu0 0.0
        %450 = vmatpush1.msra.mxu0 0.0
        %451 = vmatprep.subr.mxu0 0.0
        %452 = vmatpush1.msra.mxu0 0.0
        %453 = vmatprep.subr.mxu0 0.0
        %454 = vmatpush1.msra.mxu0 0.0
        %455 = vmatprep.subr.mxu0 0.0
        %456 = vmatpush1.msra.mxu0 0.0
        %457 = vmatprep.subr.mxu0 0.0
        %458 = vmatpush1.msra.mxu0 0.0
        %459 = vmatprep.subr.mxu0 0.0
        %460 = vmatpush1.msra.mxu0 0.0
        %461 = vmatprep.subr.mxu0 0.0
        %462 = vmatpush1.msra.mxu0 0.0
        %463 = vmatprep.subr.mxu0 0.0
        %464 = vmatpush1.msra.mxu0 0.0
        %465 = vmatprep.subr.mxu0 0.0
        %466 = vmatpush1.msra.mxu0 0.0
        %467 = vmatprep.subr.mxu0 0.0
        %468 = vmatpush1.msra.mxu0 0.0
        %469 = vmatprep.subr.mxu0 0.0
        %470 = vmatpush1.msra.mxu0 0.0
        %471 = vmatprep.subr.mxu0 0.0
        %472 = vmatpush1.msra.mxu0 0.0
        %473 = vmatprep.subr.mxu0 0.0
        %474 = vmatpush1.msra.mxu0 0.0
        %475 = vmatprep.subr.mxu0 0.0
        %476 = vmatpush1.msra.mxu0 0.0
        %477 = vmatprep.subr.mxu0 0.0
        %478 = vmatpush1.msra.mxu0 0.0
        %479 = vmatprep.subr.mxu0 0.0
        %480 = vmatpush1.msra.mxu0 0.0
        %481 = vmatprep.subr.mxu0 0.0
        %482 = vmatpush1.msra.mxu0 0.0
        %483 = vmatprep.subr.mxu0 0.0
        %484 = vmatpush1.msra.mxu0 0.0
        %485 = vmatprep.subr.mxu0 0.0
        %486 = vmatpush1.msra.mxu0 0.0
        %487 = vmatprep.mubr.f32.mxu0 0.0
        %488 = vmatmul.mubr.f32.gmra.mrb[0].mxu0 %v418
        %v489 = vpop.f32.mrb[0].mxu0
        %v490 = vadd.f32 0.0, %v489
        %v491 = vpop.f32.mrb[0].mxu0
        %492 = vmatprep.mubr.f32.mxu0 0.0
        %493 = vmatmul.mubr.f32.gmra.mrb[0].mxu0 %v421
        %v494 = vpop.f32.mrb[0].mxu0
        %v495 = vadd.f32 0.0, %v494
        %v496 = vpop.f32.mrb[0].mxu0
        %497 = vdwg.mxu0
        %v498 = vld [vmem:[%s3] sm:$0x1]
        %v500 = vlaneseq
        %v501 = vshrl.u32 %v500, 7
        %v502 = vsub.s32 0, %v501
        %v503 = vrot.slane %v498, %v502
        %504 = vrot.lane.b32.xlu0 %v503, 32
        %v505 = vpop.permute.xlu0 %504
        %v507 = vadd.f32 %v490, %v505
        %v508 = vadd.f32 %v495, %v505
        %v509 = vld [vmem:[%s4] sm:$0x1]
        %v510 = vld [vmem:[%s5] sm:$0x1]
        %513 = vrot.lane.b32.xlu0 %v507, 96
        %v514 = vpop.permute.xlu0 %513
        %515 = vrot.lane.b32.xlu0 %v508, 96
        %v516 = vpop.permute.xlu0 %515
        %vm519 = vcmask 523264
        %v520 = vsel %vm519, %v514, 0.0
        %521 = vadd.xlane.f32.xlu0 %v520
        %v522 = vpop.xlane.xlu0 %521
        %v523 = vsel %vm519, %v516, 0.0
        %524 = vadd.xlane.f32.xlu0 %v523
        %v525 = vpop.xlane.xlu0 %524
        %v526 = vrcp.pop 64.0
        %v527 = vmul.f32 %v522, %v526
        %v528 = vmul.f32 %v525, %v526
        %v529 = vsub.f32 %v507, %v527
        %v530 = vsub.f32 %v508, %v528
        %v531 = vmul.f32 %v529, %v529
        %v532 = vmul.f32 %v530, %v530
        %535 = vrot.lane.b32.xlu0 %v531, 96
        %v536 = vpop.permute.xlu0 %535
        %537 = vrot.lane.b32.xlu0 %v532, 96
        %v538 = vpop.permute.xlu0 %537
        %v541 = vsel %vm519, %v536, 0.0
        %542 = vadd.xlane.f32.xlu0 %v541
        %v543 = vpop.xlane.xlu0 %542
        %v544 = vsel %vm519, %v538, 0.0
        %545 = vadd.xlane.f32.xlu0 %v544
        %v546 = vpop.xlane.xlu0 %545
        %v547 = vmul.f32 %v543, %v526
        %v548 = vmul.f32 %v546, %v526
        %v549 = vadd.f32 %v547, 1e-05
        %v550 = vadd.f32 %v548, 1e-05
        %v551 = vrsqrt.pop %v549
        %v552 = vrsqrt.pop %v550
        %v553 = vmul.f32 %v529, %v551
        %v554 = vmul.f32 %v530, %v552
        %v556 = vlaneseq
        %v557 = vshrl.u32 %v556, 7
        %v558 = vsub.s32 0, %v557
        %v559 = vrot.slane %v509, %v558
        %560 = vrot.lane.b32.xlu0 %v559, 32
        %v561 = vpop.permute.xlu0 %560
        %v563 = vmul.f32 %v553, %v561
        %v564 = vmul.f32 %v554, %v561
        %v566 = vlaneseq
        %v567 = vshrl.u32 %v566, 7
        %v568 = vsub.s32 0, %v567
        %v569 = vrot.slane %v510, %v568
        %570 = vrot.lane.b32.xlu0 %v569, 32
        %v571 = vpop.permute.xlu0 %570
        %v573 = vadd.f32 %v563, %v571
        %v574 = vadd.f32 %v564, %v571
        %v575 = vxor.u32 %v573, 2147483648
        %v576 = vxor.u32 %v574, 2147483648
        %v577 = vmul.f32 %v575, 1.442695
        %v578 = vpow.pop %v577
        %v579 = vmul.f32 %v576, 1.442695
        %v580 = vpow.pop %v579
        %v581 = vadd.f32 %v578, 1.0
        %v582 = vadd.f32 %v580, 1.0
        %v583 = vrcp.pop %v581
        %v584 = vmul.f32 1.0, %v583
        %v585 = vrcp.pop %v582
        %v586 = vmul.f32 1.0, %v585
        %v587 = vsub.f32 1.0, %v584
        %v588 = vsub.f32 1.0, %v586
        %591 = vrot.lane.b32.xlu0 %v490, 32
        %v592 = vpop.permute.xlu0 %591
        %593 = vrot.lane.b32.xlu0 %v495, 32
        %v594 = vpop.permute.xlu0 %593
        %v597 = vmul.f32 %v587, %v592
        %v598 = vmul.f32 %v588, %v594
        %p599 = scmp.eq.s32.totalorder %s34, 0
        // Predicated region
        $region61: #{tpu_custom_call.1} parent=51 // pred_check
          %p600 = pneg %p599
        $region62: #{tpu_custom_call.1} parent=51 // pred_check_branch
          %602 = sbr.rel (%p600) target = $region64
        $region63: #{tpu_custom_call.1} parent=51 // pred_region
          %v603 = vld [vmem:[%s406] sm:$0x1]
          %v604 = vld [vmem:[%s406 + $0x1] sm:$0x1]
          %vm605 = vcmask 253952
          %606 = vst.msk [vmem:[#allocation2] sm:$0x1] %vm605, %v603
          %607 = vst.msk [vmem:[#allocation2 + $0x1] sm:$0x1] %vm605, %v604
        $region64: #{tpu_custom_call.1} parent=51 // pred_fallthru
          _
        %v610 = vrot.slane %v584, 7
        %v611 = vrot.slane %v586, 7
        %612 = vrot.lane.b32.xlu0 %v610, 96
        %v613 = vpop.permute.xlu0 %612
        %614 = vrot.lane.b32.xlu0 %v611, 96
        %v615 = vpop.permute.xlu0 %614
        %vm618 = vcmask 1040384
        %v619 = vsel %vm618, 1.0, %v613
        %v620 = vsel %vm618, 1.0, %v615
        %v623 = vrot.slane %v597, 7
        %v624 = vrot.slane %v598, 7
        %625 = vrot.lane.b32.xlu0 %v623, 96
        %v626 = vpop.permute.xlu0 %625
        %627 = vrot.lane.b32.xlu0 %v624, 96
        %v628 = vpop.permute.xlu0 %627
        %v631 = vsel %vm618, 0.0, %v626
        %v632 = vsel %vm618, 0.0, %v628
        %635 = vrot.lane.b32.xlu0 %v631, 32
        %v636 = vpop.permute.xlu0 %635
        %637 = vrot.lane.b32.xlu0 %v632, 32
        %v638 = vpop.permute.xlu0 %637
        %v641 = vmul.f32 %v584, %v636
        %v642 = vmul.f32 %v586, %v638
        %v643 = vadd.f32 %v641, %v597
        %v644 = vadd.f32 %v642, %v598
        %647 = vrot.lane.b32.xlu0 %v619, 32
        %v648 = vpop.permute.xlu0 %647
        %649 = vrot.lane.b32.xlu0 %v620, 32
        %v650 = vpop.permute.xlu0 %649
        %v653 = vmul.f32 %v584, %v648
        %v654 = vmul.f32 %v586, %v650
        %v657 = vrot.slane %v653, 6
        %v658 = vrot.slane %v654, 6
        %659 = vrot.lane.b32.xlu0 %v657, 96
        %v660 = vpop.permute.xlu0 %659
        %661 = vrot.lane.b32.xlu0 %v658, 96
        %v662 = vpop.permute.xlu0 %661
        %vm665 = vcmask 1041408
        %v666 = vsel %vm665, 1.0, %v660
        %v667 = vsel %vm665, 1.0, %v662
        %v670 = vrot.slane %v643, 6
        %v671 = vrot.slane %v644, 6
        %672 = vrot.lane.b32.xlu0 %v670, 96
        %v673 = vpop.permute.xlu0 %672
        %674 = vrot.lane.b32.xlu0 %v671, 96
        %v675 = vpop.permute.xlu0 %674
        %v678 = vsel %vm665, 0.0, %v673
        %v679 = vsel %vm665, 0.0, %v675
        %682 = vrot.lane.b32.xlu0 %v678, 32
        %v683 = vpop.permute.xlu0 %682
        %684 = vrot.lane.b32.xlu0 %v679, 32
        %v685 = vpop.permute.xlu0 %684
        %v688 = vmul.f32 %v653, %v683
        %v689 = vmul.f32 %v654, %v685
        %v690 = vadd.f32 %v688, %v643
        %v691 = vadd.f32 %v689, %v644
        %694 = vrot.lane.b32.xlu0 %v666, 32
        %v695 = vpop.permute.xlu0 %694
        %696 = vrot.lane.b32.xlu0 %v667, 32
        %v697 = vpop.permute.xlu0 %696
        %v700 = vmul.f32 %v653, %v695
        %v701 = vmul.f32 %v654, %v697
        %v704 = vrot.slane %v700, 4
        %v705 = vrot.slane %v701, 4
        %706 = vrot.lane.b32.xlu0 %v704, 96
        %v707 = vpop.permute.xlu0 %706
        %708 = vrot.lane.b32.xlu0 %v705, 96
        %v709 = vpop.permute.xlu0 %708
        %vm712 = vcmask 1043456
        %v713 = vsel %vm712, 1.0, %v707
        %v714 = vsel %vm712, 1.0, %v709
        %v717 = vrot.slane %v690, 4
        %v718 = vrot.slane %v691, 4
        %719 = vrot.lane.b32.xlu0 %v717, 96
        %v720 = vpop.permute.xlu0 %719
        %721 = vrot.lane.b32.xlu0 %v718, 96
        %v722 = vpop.permute.xlu0 %721
        %v725 = vsel %vm712, 0.0, %v720
        %v726 = vsel %vm712, 0.0, %v722
        %729 = vrot.lane.b32.xlu0 %v725, 32
        %v730 = vpop.permute.xlu0 %729
        %731 = vrot.lane.b32.xlu0 %v726, 32
        %v732 = vpop.permute.xlu0 %731
        %v735 = vmul.f32 %v700, %v730
        %v736 = vmul.f32 %v701, %v732
        %v737 = vadd.f32 %v735, %v690
        %v738 = vadd.f32 %v736, %v691
        %741 = vrot.lane.b32.xlu0 %v713, 32
        %v742 = vpop.permute.xlu0 %741
        %743 = vrot.lane.b32.xlu0 %v714, 32
        %v744 = vpop.permute.xlu0 %743
        %v747 = vmul.f32 %v700, %v742
        %v748 = vmul.f32 %v701, %v744
        %v749 = vld [vmem:[#allocation2] sm:$0x1]
        %v750 = vld [vmem:[#allocation2 + $0x1] sm:$0x1]
        %v753 = vlaneseq
        %v754 = vshrl.u32 %v753, 7
        %v755 = vsub.s32 0, %v754
        %v756 = vrot.slane %v749, %v755
        %v757 = vlaneseq
        %v758 = vshrl.u32 %v757, 7
        %v759 = vsub.s32 0, %v758
        %v760 = vrot.slane %v750, %v759
        %761 = vrot.lane.b32.xlu0 %v756, 32
        %v762 = vpop.permute.xlu0 %761
        %763 = vrot.lane.b32.xlu0 %v760, 32
        %v764 = vpop.permute.xlu0 %763
        %v767 = vmul.f32 %v747, %v762
        %v768 = vmul.f32 %v748, %v764
        %v769 = vadd.f32 %v767, %v737
        %v770 = vadd.f32 %v768, %v738
        %773 = vrot.lane.b32.xlu0 %v769, 96
        %v774 = vpop.permute.xlu0 %773
        %775 = vrot.lane.b32.xlu0 %v770, 96
        %v776 = vpop.permute.xlu0 %775
        %vm779 = vcmask 261127
        %780 = vst.msk [vmem:[#allocation2 - $0x7] sm:$0x80] %vm779, %v774
        %781 = vst.msk [vmem:[#allocation2 - $0x6] sm:$0x80] %vm779, %v776
        %v782 = vld [vmem:[%s6] sm:$0x1]
        %v783 = vld [vmem:[%s7] sm:$0x1]
        %v784 = vsel %vm416, %v774, 0.0
        %785 = vadd.xlane.f32.xlu0 %v784
        %v786 = vpop.xlane.xlu0 %785
        %v787 = vsel %vm416, %v776, 0.0
        %788 = vadd.xlane.f32.xlu0 %v787
        %v789 = vpop.xlane.xlu0 %788
        %v790 = vrcp.pop 32.0
        %v791 = vmul.f32 %v786, %v790
        %v792 = vmul.f32 %v789, %v790
        %v793 = vsub.f32 %v769, %v791
        %v794 = vsub.f32 %v770, %v792
        %v795 = vmul.f32 %v793, %v793
        %v796 = vmul.f32 %v794, %v794
        %799 = vrot.lane.b32.xlu0 %v795, 96
        %v800 = vpop.permute.xlu0 %799
        %801 = vrot.lane.b32.xlu0 %v796, 96
        %v802 = vpop.permute.xlu0 %801
        %v805 = vsel %vm416, %v800, 0.0
        %806 = vadd.xlane.f32.xlu0 %v805
        %v807 = vpop.xlane.xlu0 %806
        %v808 = vsel %vm416, %v802, 0.0
        %809 = vadd.xlane.f32.xlu0 %v808
        %v810 = vpop.xlane.xlu0 %809
        %v811 = vmul.f32 %v807, %v790
        %v812 = vmul.f32 %v810, %v790
        %v813 = vadd.f32 %v811, 1e-05
        %v814 = vadd.f32 %v812, 1e-05
        %v815 = vrsqrt.pop %v813
        %v816 = vrsqrt.pop %v814
        %v817 = vmul.f32 %v793, %v815
        %v818 = vmul.f32 %v794, %v816
        %v820 = vlaneseq
        %v821 = vshrl.u32 %v820, 7
        %v822 = vsub.s32 0, %v821
        %v823 = vrot.slane %v782, %v822
        %824 = vrot.lane.b32.xlu0 %v823, 32
        %v825 = vpop.permute.xlu0 %824
        %v827 = vmul.f32 %v817, %v825
        %v828 = vmul.f32 %v818, %v825
        %v830 = vlaneseq
        %v831 = vshrl.u32 %v830, 7
        %v832 = vsub.s32 0, %v831
        %v833 = vrot.slane %v783, %v832
        %834 = vrot.lane.b32.xlu0 %v833, 32
        %v835 = vpop.permute.xlu0 %834
        %v837 = vadd.f32 %v827, %v835
        %v838 = vadd.f32 %v828, %v835
        %v839 = vxor.u32 %v837, 2147483648
        %v840 = vxor.u32 %v838, 2147483648
        %v841 = vmul.f32 %v839, 1.442695
        %v842 = vpow.pop %v841
        %v843 = vmul.f32 %v840, 1.442695
        %v844 = vpow.pop %v843
        %v845 = vadd.f32 %v842, 1.0
        %v846 = vadd.f32 %v844, 1.0
        %v847 = vrcp.pop %v845
        %v848 = vmul.f32 1.0, %v847
        %v849 = vrcp.pop %v846
        %v850 = vmul.f32 1.0, %v849
        %853 = vrot.lane.b32.xlu0 %v848, 32
        %v854 = vpop.permute.xlu0 %853
        %855 = vrot.lane.b32.xlu0 %v850, 32
        %v856 = vpop.permute.xlu0 %855
        %v859 = vmul.f32 %v584, %v854
        %v860 = vmul.f32 %v586, %v856
        %861 = vrot.lane.b32.xlu0 %v410, 64
        %v862 = vpop.permute.xlu0 %861
        %863 = vrot.lane.b32.xlu0 %v411, 64
        %v864 = vpop.permute.xlu0 %863
        %v867 = vmul.f32 %v587, %v862
        %v868 = vmul.f32 %v588, %v864
        %v869 = vadd.f32 %v859, %v867
        %v870 = vadd.f32 %v860, %v868
        %873 = vrot.lane.b32.xlu0 %v869, 64
        %v874 = vpop.permute.xlu0 %873
        %875 = vrot.lane.b32.xlu0 %v870, 64
        %v876 = vpop.permute.xlu0 %875
        %879 = vst.msk [vmem:[%s399] sm:$0xff] %vm416, %v874
        %880 = vst.msk [vmem:[%s399 + $0x8] sm:$0xff] %vm416, %v876
        %p881 = scmp.eq.s32.totalorder %s34, 1
        // Predicated region
        $region65: #{tpu_custom_call.1} parent=51 // pred_check
          %p882 = pneg %p881
        $region66: #{tpu_custom_call.1} parent=51 // pred_check_branch
          %884 = sbr.rel (%p882) target = $region68
        $region67: #{tpu_custom_call.1} parent=51 // pred_region
          %v885 = vld [vmem:[#allocation2] sm:$0x1]
          %v886 = vld [vmem:[#allocation2 + $0x1] sm:$0x1]
          %vm887 = vcmask 253952
          %888 = vst.msk [vmem:[#allocation9] sm:$0x1] %vm887, %v885
          %889 = vst.msk [vmem:[#allocation9 + $0x1] sm:$0x1] %vm887, %v886
        $region68: #{tpu_custom_call.1} parent=51 // pred_fallthru
          _
        %s890 = sand.u32 %s231, 1
        %s891 = scalar_lea.sflag [#allocation5], %s890
        %s892 = sand.u32 %s231, 1
        %s893 = smul.addr %s892, 16
        %s894 = scalar_lea.vmem [#allocation8], %s893
        // Predicated region
        $region69: #{tpu_custom_call.1} parent=51 // pred_check
          %p895 = pneg %p241
        $region70: #{tpu_custom_call.1} parent=51 // pred_check_branch
          %897 = sbr.rel (%p895) target = $region72
        $region71: #{tpu_custom_call.1} parent=51 // pred_region
          %s898 = smul.u32 2, %s33
          %s900 = ssub.s32 256, 256
          %901 = vsyncadd %s891, %s900
          %s902 = smul.addr %s898, 2
          %s903 = sadd.s32 %s34, %s902
          %s904 = smul.addr %s903, 128
          %s905 = scalar_lea.hbm %s8, %s904
          %s906 = sshll.u32 %s894, 4
          %s907 = int_to_ptr.vmem [resolvable:$true] %s906
          %912 = dma.vmem_to_hbm [thread:$0]  %s907, 256, %s905, %s891, 128, 256, 8
        $region72: #{tpu_custom_call.1} parent=51 // pred_fallthru
          _
        // Predicated region
        $region73: #{tpu_custom_call.1} parent=51 // pred_check
          %p913 = pneg %p267
        $region74: #{tpu_custom_call.1} parent=51 // pred_check_branch
          %915 = sbr.rel (%p913) target = $region76
        $region75: #{tpu_custom_call.1} parent=51 // pred_region
          %s916 = smul.u32 2, %s33
          %s918 = ssub.s32 32, 32
          %919 = vsyncadd [#allocation10], %s918
          %s920 = smul.addr %s916, 16
          %s921 = scalar_lea.hbm %s9, %s920
          %s922 = sshll.u32 [#allocation9], 4
          %s923 = int_to_ptr.vmem [resolvable:$true] %s922
          %928 = dma.vmem_to_hbm [thread:$0]  %s923, 32, %s921, [#allocation10], 16, 16, 1
        $region76: #{tpu_custom_call.1} parent=51 // pred_fallthru
          _
        // Predicated region
        $region77: #{tpu_custom_call.1} parent=51 // pred_check
          %p929 = pneg %p267
        $region78: #{tpu_custom_call.1} parent=51 // pred_check_branch
          %931 = sbr.rel (%p929) target = $region80
        $region79: #{tpu_custom_call.1} parent=51 // pred_region
          %932 = dma.done [#allocation10], 32
        $region80: #{tpu_custom_call.1} parent=51 // pred_fallthru
          _
      $region52: #{tpu_custom_call.1} parent=5 // pred_fallthru
        _
      %p933 = scmp.le.s32.totalorder 2, %s24
      // Predicated region
      $region81: #{tpu_custom_call.1} parent=5 // pred_check
        %p934 = pneg %p933
      $region82: #{tpu_custom_call.1} parent=5 // pred_check_branch
        %936 = sbr.rel (%p934) target = $region84
      $region83: #{tpu_custom_call.1} parent=5 // pred_region
        %s937 = ssub.s32 %s24, 2
        // Predicated region
        $region85: #{tpu_custom_call.1} parent=83 // pred_check
          %p938 = pneg %p247
        $region86: #{tpu_custom_call.1} parent=83 // pred_check_branch
          %940 = sbr.rel (%p938) target = $region88
        $region87: #{tpu_custom_call.1} parent=83 // pred_region
          %s941 = sand.u32 %s232, 1
          %s942 = scalar_lea.sflag [#allocation5], %s941
          %s943 = sand.u32 %s232, 1
          %s944 = smul.addr %s943, 16
          %s945 = scalar_lea.vmem [#allocation8], %s944
          %946 = dma.done %s942, 256
        $region88: #{tpu_custom_call.1} parent=83 // pred_fallthru
          _
      $region84: #{tpu_custom_call.1} parent=5 // pred_fallthru
        _
    $region6: #{tpu_custom_call.1} parent=1 // loop_footer
      %s28 = sadd.s32 1, %s24
    $region7: #{tpu_custom_call.1} parent=1 // loop_footer_branch
      %23 = sbr.rel target = $region3
    $region8: #{tpu_custom_call.1} parent=1 // loop_exit
      _
    %947 = vsyncpa [#allocation4], 1
    %s948 = scalar_lea.sflag [#allocation4], 1
    %949 = vsyncpa %s948, 1
    %950 = vsyncpa [#allocation7], 1
    %951 = vsyncpa [#allocation5], 1
    %s952 = scalar_lea.sflag [#allocation5], 1
    %953 = vsyncpa %s952, 1
    %954 = vsyncpa [#allocation10], 1

</llo_original>
